<compile_context>
chip_gen: v7x
topology: tpu7x:2x2x1
jax: 0.10.0
libtpu: 0.0.40
codegen_flags: <defaults>
</compile_context>

<pallas_src>
import functools
import math

import jax
import jax.numpy as jnp
from jax.experimental import pallas as pl
from jax.experimental.pallas import tpu as pltpu

LANE = 128  # lane-dense padded feature width for every layer


# ----------------------------------------------------------------------------
# Positional embedding (matches the PyTorch PositionalEmbedding exactly)
# ----------------------------------------------------------------------------
def positional_embedding(input_dim, n=10000.0):
    assert input_dim % 2 == 0
    positions = jnp.arange(0, input_dim, dtype=jnp.float32)
    denominators = jnp.power(
        n, 2.0 * jnp.arange(0, input_dim // 2, dtype=jnp.float32) / input_dim
    )
    even_pos = positions[0::2]                       # 0, 2, 4, ...
    pe = jnp.zeros((input_dim,), dtype=jnp.float32)
    pe = pe.at[0::2].set(jnp.sin(even_pos / denominators))
    pe = pe.at[1::2].set(jnp.cos(even_pos / denominators))
    return pe[None, :]                               # (1, input_dim)


def _gelu_exact(x):
    # PyTorch nn.GELU() default = exact erf formulation.
    return 0.5 * x * (1.0 + jax.lax.erf(x * (1.0 / math.sqrt(2.0))))


# ----------------------------------------------------------------------------
# Pallas kernel: fused Encoder MLP -> Decoder MLP on packed weight/bias slabs
#   x_ref:    (Bblk, 128)      lane-padded input (pe already folded into bias 0)
#   w_ref:    (L, 128, 128)    zero-padded weights, layer-stacked
#   b_ref:    (L, 128)         zero-padded biases (layer 0 includes pe@W0)
#   out_ref:  (Bblk, 128)      decoder output (lane-dense; wrapper slices)
#   feat_ref: (Bblk, 128)      encoder features (lane-dense; wrapper slices)
# ----------------------------------------------------------------------------
def _autoencoder_kernel(num_enc, num_dec, x_ref, w_ref, b_ref, out_ref, feat_ref):
    num_layers = num_enc + num_dec
    h = x_ref[...]                                   # (Bblk, 128) f32
    for li in range(num_layers):                     # statically unrolled
        w = w_ref[li]                                # (128, 128)
        b = b_ref[li:li + 1, :]                      # (1, 128)
        h = jnp.dot(h, w, preferred_element_type=jnp.float32) + b
        if li == num_enc - 1:
            # Last encoder layer: no activation; tap features here.
            feat_ref[...] = h
        elif li == num_layers - 1:
            # Last decoder layer: ReLU, then write output.
            h = jnp.maximum(h, 0.0)
            out_ref[...] = h
        else:
            h = _gelu_exact(h)


def autoencoder_forward(x, pe, enc_params, dec_params, block_b=None):
    """enc_params / dec_params: lists of (W(in,out), b(out,)) tuples."""
    B, input_dim = x.shape
    features_dim = enc_params[-1][0].shape[1]
    num_enc, num_dec = len(enc_params), len(dec_params)
    L = num_enc + num_dec

    all_params = enc_params + dec_params
    assert all(w.shape[0] <= LANE and w.shape[1] <= LANE for w, _ in all_params), \
        "this fused kernel assumes every layer width <= 128"

    # ---- pack weights / biases into zero-padded slabs (one DMA each) --------
    w_slab = jnp.zeros((L, LANE, LANE), jnp.float32)
    b_slab = jnp.zeros((L, LANE), jnp.float32)
    for li, (w, b) in enumerate(all_params):
        di, do = w.shape
        w_slab = w_slab.at[li, :di, :do].set(w)
        b_slab = b_slab.at[li, :do].set(b)

    # ---- fold positional embedding into first-layer bias (exact algebra) ----
    pe_pad = jnp.zeros((1, LANE), jnp.float32).at[:, :input_dim].set(pe)
    b_slab = b_slab.at[0].add((pe_pad @ w_slab[0])[0])

    # ---- lane-pad x and pick a batch block ----------------------------------
    if block_b is None:
        block_b = min(128, ((B + 7) // 8) * 8)       # small B -> one grid step
    Bp = ((B + block_b - 1) // block_b) * block_b
    x_pad = jnp.zeros((Bp, LANE), jnp.float32).at[:B, :input_dim].set(x)

    kernel = functools.partial(_autoencoder_kernel, num_enc, num_dec)
    grid = (Bp // block_b,)

    out_pad, feat_pad = pl.pallas_call(
        kernel,
        out_shape=(
            jax.ShapeDtypeStruct((Bp, LANE), jnp.float32),
            jax.ShapeDtypeStruct((Bp, LANE), jnp.float32),
        ),
        grid=grid,
        in_specs=[
            pl.BlockSpec((block_b, LANE), lambda i: (i, 0)),       # x streams
            pl.BlockSpec((L, LANE, LANE), lambda i: (0, 0, 0)),    # weights: resident
            pl.BlockSpec((L, LANE), lambda i: (0, 0)),             # biases: resident
        ],
        out_specs=(
            pl.BlockSpec((block_b, LANE), lambda i: (i, 0)),
            pl.BlockSpec((block_b, LANE), lambda i: (i, 0)),
        ),
        compiler_params=pltpu.CompilerParams(
            dimension_semantics=("parallel",),
        ),
    )(x_pad, w_slab, b_slab)

    return out_pad[:B, :input_dim], feat_pad[:B, :features_dim]


# ----------------------------------------------------------------------------
# Pure-JAX reference (for correctness check)
# ----------------------------------------------------------------------------
def reference_forward(x, pe, enc_params, dec_params):
    h = x + pe
    for i, (w, b) in enumerate(enc_params):
        h = h @ w + b
        if i < len(enc_params) - 1:
            h = _gelu_exact(h)
    features = h
    for i, (w, b) in enumerate(dec_params):
        h = h @ w + b
        if i < len(dec_params) - 1:
            h = _gelu_exact(h)
        else:
            h = jnp.maximum(h, 0.0)
    return h, features


# ----------------------------------------------------------------------------
# Parameter construction (deterministic, synthetic)
# ----------------------------------------------------------------------------
def init_linear(key, in_dim, out_dim):
    kw, kb = jax.random.split(key)
    bound = 1.0 / math.sqrt(in_dim)
    w = jax.random.uniform(kw, (in_dim, out_dim), jnp.float32, -bound, bound)
    b = jax.random.uniform(kb, (out_dim,), jnp.float32, -bound, bound)
    return w, b


def build_params(key, input_dim, features_dim, inner_layers):
    enc_dims = [input_dim] + list(inner_layers) + [features_dim]
    dec_dims = [features_dim] + list(inner_layers[::-1]) + [input_dim]
    enc_params, dec_params = [], []
    for i in range(len(enc_dims) - 1):
        key, sub = jax.random.split(key)
        enc_params.append(init_linear(sub, enc_dims[i], enc_dims[i + 1]))
    for i in range(len(dec_dims) - 1):
        key, sub = jax.random.split(key)
        dec_params.append(init_linear(sub, dec_dims[i], dec_dims[i + 1]))
    return enc_params, dec_params


if __name__ == "__main__":
    # Small, module-consistent shapes. (Dropout exists in the module but is
    # never applied in forward(), so it is intentionally omitted.)
    B = 8
    input_dim = 64          # must be even for the sinusoidal embedding
    features_dim = 16
    inner_layers = (48, 32)

    key = jax.random.PRNGKey(0)
    key, xkey, pkey = jax.random.split(key, 3)
    x = jax.random.normal(xkey, (B, input_dim), dtype=jnp.float32)
    pe = positional_embedding(input_dim)
    enc_params, dec_params = build_params(pkey, input_dim, features_dim, inner_layers)

    out_dec, features = autoencoder_forward(x, pe, enc_params, dec_params)
    out_dec = jax.block_until_ready(out_dec)
    features = jax.block_until_ready(features)

    ref_out, ref_feat = reference_forward(x, pe, enc_params, dec_params)
    assert out_dec.shape == (B, input_dim) and features.shape == (B, features_dim)
    assert jnp.allclose(out_dec, ref_out, atol=1e-4, rtol=1e-4)
    assert jnp.allclose(features, ref_feat, atol=1e-4, rtol=1e-4)

    print("KERNEL_OK")
</pallas_src>

<mosaic_0001>
module attributes {stable_mosaic.version = 11 : i64} {
  func.func @_autoencoder_kernel(%arg0: i32, %arg1: memref<8x128xf32, #tpu.memory_space<vmem>>, %arg2: memref<6x128x128xf32, #tpu.memory_space<vmem>>, %arg3: memref<6x128xf32, #tpu.memory_space<vmem>>, %arg4: memref<8x128xf32, #tpu.memory_space<vmem>>, %arg5: memref<8x128xf32, #tpu.memory_space<vmem>>) attributes {dimension_semantics = [#tpu.dimension_semantics<parallel>], iteration_bounds = array<i64: 1>, scalar_prefetch = 0 : i64, scratch_operands = 0 : i64, tpu.core_type = #tpu.core_type<tc>, window_params = [{transform_indices = @transform_0, window_bounds = array<i64: 8, 128>}, {pipeline_mode = #tpu.pipeline_mode<synchronous>, transform_indices = @transform_1, window_bounds = array<i64: 6, 128, 128>}, {pipeline_mode = #tpu.pipeline_mode<synchronous>, transform_indices = @transform_2, window_bounds = array<i64: 6, 128>}, {transform_indices = @transform_3, window_bounds = array<i64: 8, 128>}, {transform_indices = @transform_4, window_bounds = array<i64: 8, 128>}]} {
    %c0 = arith.constant 0 : index
    %c0_0 = arith.constant 0 : index
    %0 = vector.load %arg1[%c0, %c0_0] : memref<8x128xf32, #tpu.memory_space<vmem>>, vector<8x128xf32>
    %c0_1 = arith.constant 0 : index
    %c0_2 = arith.constant 0 : index
    %c0_3 = arith.constant 0 : index
    %1 = vector.load %arg2[%c0_1, %c0_2, %c0_3] : memref<6x128x128xf32, #tpu.memory_space<vmem>>, vector<1x128x128xf32>
    %2 = vector.shape_cast %1 : vector<1x128x128xf32> to vector<128x128xf32>
    %c0_4 = arith.constant 0 : index
    %c0_5 = arith.constant 0 : index
    %3 = vector.load %arg3[%c0_4, %c0_5] : memref<6x128xf32, #tpu.memory_space<vmem>>, vector<1x128xf32>
    %cst = arith.constant dense<0.000000e+00> : vector<8x128xf32>
    %4 = tpu.matmul %0, %2, %cst {dimension_numbers = #tpu.dot_dimension_numbers<[1], [0], [0], [1], [0, 0, 1, 1], [], []>} : vector<8x128xf32>, vector<128x128xf32>, vector<8x128xf32> -> vector<8x128xf32>
    %5 = vector.broadcast %3 : vector<1x128xf32> to vector<8x128xf32>
    %6 = arith.addf %4, %5 : vector<8x128xf32>
    %cst_6 = arith.constant 5.000000e-01 : f32
    %7 = vector.broadcast %cst_6 : f32 to vector<8x128xf32>
    %8 = arith.mulf %7, %6 : vector<8x128xf32>
    %cst_7 = arith.constant 0.707106769 : f32
    %9 = vector.broadcast %cst_7 : f32 to vector<8x128xf32>
    %10 = arith.mulf %6, %9 : vector<8x128xf32>
    %11 = math.erf %10 : vector<8x128xf32>
    %cst_8 = arith.constant 1.000000e+00 : f32
    %12 = vector.broadcast %cst_8 : f32 to vector<8x128xf32>
    %13 = arith.addf %12, %11 : vector<8x128xf32>
    %14 = arith.mulf %8, %13 : vector<8x128xf32>
    %c1 = arith.constant 1 : index
    %c0_9 = arith.constant 0 : index
    %c0_10 = arith.constant 0 : index
    %15 = vector.load %arg2[%c1, %c0_9, %c0_10] : memref<6x128x128xf32, #tpu.memory_space<vmem>>, vector<1x128x128xf32>
    %16 = vector.shape_cast %15 : vector<1x128x128xf32> to vector<128x128xf32>
    %c1_11 = arith.constant 1 : index
    %c0_12 = arith.constant 0 : index
    %17 = vector.load %arg3[%c1_11, %c0_12] : memref<6x128xf32, #tpu.memory_space<vmem>>, vector<1x128xf32>
    %cst_13 = arith.constant dense<0.000000e+00> : vector<8x128xf32>
    %18 = tpu.matmul %14, %16, %cst_13 {dimension_numbers = #tpu.dot_dimension_numbers<[1], [0], [0], [1], [0, 0, 1, 1], [], []>} : vector<8x128xf32>, vector<128x128xf32>, vector<8x128xf32> -> vector<8x128xf32>
    %19 = vector.broadcast %17 : vector<1x128xf32> to vector<8x128xf32>
    %20 = arith.addf %18, %19 : vector<8x128xf32>
    %cst_14 = arith.constant 5.000000e-01 : f32
    %21 = vector.broadcast %cst_14 : f32 to vector<8x128xf32>
    %22 = arith.mulf %21, %20 : vector<8x128xf32>
    %cst_15 = arith.constant 0.707106769 : f32
    %23 = vector.broadcast %cst_15 : f32 to vector<8x128xf32>
    %24 = arith.mulf %20, %23 : vector<8x128xf32>
    %25 = math.erf %24 : vector<8x128xf32>
    %cst_16 = arith.constant 1.000000e+00 : f32
    %26 = vector.broadcast %cst_16 : f32 to vector<8x128xf32>
    %27 = arith.addf %26, %25 : vector<8x128xf32>
    %28 = arith.mulf %22, %27 : vector<8x128xf32>
    %c2 = arith.constant 2 : index
    %c0_17 = arith.constant 0 : index
    %c0_18 = arith.constant 0 : index
    %29 = vector.load %arg2[%c2, %c0_17, %c0_18] : memref<6x128x128xf32, #tpu.memory_space<vmem>>, vector<1x128x128xf32>
    %30 = vector.shape_cast %29 : vector<1x128x128xf32> to vector<128x128xf32>
    %c2_19 = arith.constant 2 : index
    %c0_20 = arith.constant 0 : index
    %31 = vector.load %arg3[%c2_19, %c0_20] : memref<6x128xf32, #tpu.memory_space<vmem>>, vector<1x128xf32>
    %cst_21 = arith.constant dense<0.000000e+00> : vector<8x128xf32>
    %32 = tpu.matmul %28, %30, %cst_21 {dimension_numbers = #tpu.dot_dimension_numbers<[1], [0], [0], [1], [0, 0, 1, 1], [], []>} : vector<8x128xf32>, vector<128x128xf32>, vector<8x128xf32> -> vector<8x128xf32>
    %33 = vector.broadcast %31 : vector<1x128xf32> to vector<8x128xf32>
    %34 = arith.addf %32, %33 : vector<8x128xf32>
    %c0_22 = arith.constant 0 : index
    %c0_23 = arith.constant 0 : index
    %35 = vector.load %arg5[%c0_22, %c0_23] : memref<8x128xf32, #tpu.memory_space<vmem>>, vector<8x128xf32>
    tpu.vector_store %arg5[%c0_22, %c0_23], %34 {strides = array<i32>} : memref<8x128xf32, #tpu.memory_space<vmem>>, vector<8x128xf32>,
    %c3 = arith.constant 3 : index
    %c0_24 = arith.constant 0 : index
    %c0_25 = arith.constant 0 : index
    %36 = vector.load %arg2[%c3, %c0_24, %c0_25] : memref<6x128x128xf32, #tpu.memory_space<vmem>>, vector<1x128x128xf32>
    %37 = vector.shape_cast %36 : vector<1x128x128xf32> to vector<128x128xf32>
    %c3_26 = arith.constant 3 : index
    %c0_27 = arith.constant 0 : index
    %38 = vector.load %arg3[%c3_26, %c0_27] : memref<6x128xf32, #tpu.memory_space<vmem>>, vector<1x128xf32>
    %cst_28 = arith.constant dense<0.000000e+00> : vector<8x128xf32>
    %39 = tpu.matmul %34, %37, %cst_28 {dimension_numbers = #tpu.dot_dimension_numbers<[1], [0], [0], [1], [0, 0, 1, 1], [], []>} : vector<8x128xf32>, vector<128x128xf32>, vector<8x128xf32> -> vector<8x128xf32>
    %40 = vector.broadcast %38 : vector<1x128xf32> to vector<8x128xf32>
    %41 = arith.addf %39, %40 : vector<8x128xf32>
    %cst_29 = arith.constant 5.000000e-01 : f32
    %42 = vector.broadcast %cst_29 : f32 to vector<8x128xf32>
    %43 = arith.mulf %42, %41 : vector<8x128xf32>
    %cst_30 = arith.constant 0.707106769 : f32
    %44 = vector.broadcast %cst_30 : f32 to vector<8x128xf32>
    %45 = arith.mulf %41, %44 : vector<8x128xf32>
    %46 = math.erf %45 : vector<8x128xf32>
    %cst_31 = arith.constant 1.000000e+00 : f32
    %47 = vector.broadcast %cst_31 : f32 to vector<8x128xf32>
    %48 = arith.addf %47, %46 : vector<8x128xf32>
    %49 = arith.mulf %43, %48 : vector<8x128xf32>
    %c4 = arith.constant 4 : index
    %c0_32 = arith.constant 0 : index
    %c0_33 = arith.constant 0 : index
    %50 = vector.load %arg2[%c4, %c0_32, %c0_33] : memref<6x128x128xf32, #tpu.memory_space<vmem>>, vector<1x128x128xf32>
    %51 = vector.shape_cast %50 : vector<1x128x128xf32> to vector<128x128xf32>
    %c4_34 = arith.constant 4 : index
    %c0_35 = arith.constant 0 : index
    %52 = vector.load %arg3[%c4_34, %c0_35] : memref<6x128xf32, #tpu.memory_space<vmem>>, vector<1x128xf32>
    %cst_36 = arith.constant dense<0.000000e+00> : vector<8x128xf32>
    %53 = tpu.matmul %49, %51, %cst_36 {dimension_numbers = #tpu.dot_dimension_numbers<[1], [0], [0], [1], [0, 0, 1, 1], [], []>} : vector<8x128xf32>, vector<128x128xf32>, vector<8x128xf32> -> vector<8x128xf32>
    %54 = vector.broadcast %52 : vector<1x128xf32> to vector<8x128xf32>
    %55 = arith.addf %53, %54 : vector<8x128xf32>
    %cst_37 = arith.constant 5.000000e-01 : f32
    %56 = vector.broadcast %cst_37 : f32 to vector<8x128xf32>
    %57 = arith.mulf %56, %55 : vector<8x128xf32>
    %cst_38 = arith.constant 0.707106769 : f32
    %58 = vector.broadcast %cst_38 : f32 to vector<8x128xf32>
    %59 = arith.mulf %55, %58 : vector<8x128xf32>
    %60 = math.erf %59 : vector<8x128xf32>
    %cst_39 = arith.constant 1.000000e+00 : f32
    %61 = vector.broadcast %cst_39 : f32 to vector<8x128xf32>
    %62 = arith.addf %61, %60 : vector<8x128xf32>
    %63 = arith.mulf %57, %62 : vector<8x128xf32>
    %c5 = arith.constant 5 : index
    %c0_40 = arith.constant 0 : index
    %c0_41 = arith.constant 0 : index
    %64 = vector.load %arg2[%c5, %c0_40, %c0_41] : memref<6x128x128xf32, #tpu.memory_space<vmem>>, vector<1x128x128xf32>
    %65 = vector.shape_cast %64 : vector<1x128x128xf32> to vector<128x128xf32>
    %c5_42 = arith.constant 5 : index
    %c0_43 = arith.constant 0 : index
    %66 = vector.load %arg3[%c5_42, %c0_43] : memref<6x128xf32, #tpu.memory_space<vmem>>, vector<1x128xf32>
    %cst_44 = arith.constant dense<0.000000e+00> : vector<8x128xf32>
    %67 = tpu.matmul %63, %65, %cst_44 {dimension_numbers = #tpu.dot_dimension_numbers<[1], [0], [0], [1], [0, 0, 1, 1], [], []>} : vector<8x128xf32>, vector<128x128xf32>, vector<8x128xf32> -> vector<8x128xf32>
    %68 = vector.broadcast %66 : vector<1x128xf32> to vector<8x128xf32>
    %69 = arith.addf %67, %68 : vector<8x128xf32>
    %cst_45 = arith.constant 0.000000e+00 : f32
    %70 = vector.broadcast %cst_45 : f32 to vector<8x128xf32>
    %71 = arith.maximumf %69, %70 : vector<8x128xf32>
    %c0_46 = arith.constant 0 : index
    %c0_47 = arith.constant 0 : index
    %72 = vector.load %arg4[%c0_46, %c0_47] : memref<8x128xf32, #tpu.memory_space<vmem>>, vector<8x128xf32>
    tpu.vector_store %arg4[%c0_46, %c0_47], %71 {strides = array<i32>} : memref<8x128xf32, #tpu.memory_space<vmem>>, vector<8x128xf32>,
    return
  }
  func.func @transform_0(%arg0: i32) -> (i32, i32) {
    %c0_i32 = arith.constant 0 : i32
    %c0_i32_0 = arith.constant 0 : i32
    return %arg0, %c0_i32 : i32, i32
  }
  func.func @transform_1(%arg0: i32) -> (i32, i32, i32) {
    %c0_i32 = arith.constant 0 : i32
    %c0_i32_0 = arith.constant 0 : i32
    %c0_i32_1 = arith.constant 0 : i32
    %c0_i32_2 = arith.constant 0 : i32
    return %c0_i32, %c0_i32_0, %c0_i32_1 : i32, i32, i32
  }
  func.func @transform_2(%arg0: i32) -> (i32, i32) {
    %c0_i32 = arith.constant 0 : i32
    %c0_i32_0 = arith.constant 0 : i32
    %c0_i32_1 = arith.constant 0 : i32
    return %c0_i32, %c0_i32_0 : i32, i32
  }
  func.func @transform_3(%arg0: i32) -> (i32, i32) {
    %c0_i32 = arith.constant 0 : i32
    %c0_i32_0 = arith.constant 0 : i32
    return %arg0, %c0_i32 : i32, i32
  }
  func.func @transform_4(%arg0: i32) -> (i32, i32) {
    %c0_i32 = arith.constant 0 : i32
    %c0_i32_0 = arith.constant 0 : i32
    return %arg0, %c0_i32 : i32, i32
  }
}

</mosaic_0001>

<llo_original>
// kernel: tpu_custom_call.1
$region0: #{tpu_custom_call.1}
  #allocation0 [shape = 'u32[]', space=smem, size = 0x4, offset = 0x4, fixed_abs, tag = 'smem constant byte address 0x4 - core index']
  #allocation1 [shape = 'u32[144,128]{1,0:T(1,128)}', space=vmem, size = 0x12000, scoped, tag = 'internal scratch']
  %s0 = inlined_call_operand.hbm [shape: f32[8,128], index: 0, kind: input, shape index: {}]
  %s1 = inlined_call_operand.hbm [shape: f32[6,128,128], index: 1, kind: input, shape index: {}]
  %s2 = inlined_call_operand.hbm [shape: f32[6,128], index: 2, kind: input, shape index: {}]
  %s3 = inlined_call_operand.hbm [shape: f32[8,128], index: 3, kind: output, shape index: {0}]
  %s4 = inlined_call_operand.hbm [shape: f32[8,128], index: 4, kind: output, shape index: {1}]
  %5 = xla_tuple %s3, %s4
  %s6 = sld [smem:[#allocation0]]
  $region42: #{tpu_custom_call.1} parent=0
    _
  %s8 = ssub.s32 1, %s6
  %s9 = scalar_select 0, %s8, %s6
  $region1: #{tpu_custom_call.1} parent=0
    #allocation2 [shape = 'u8[4096]{0}', space=vmem, size = 0x1000, scoped, tag = 'input window, operand 0, single buffered']
    #allocation3 [shape = 's32[1]{0}', space=sflag, size = 0x4, scoped, tag = 'scoped memory for tpu_custom_call.1']
    #allocation4 [shape = 's32[1]{0}', space=sflag, size = 0x4, scoped, tag = 'scoped memory for tpu_custom_call.1']
    #allocation5 [shape = 'u8[393216]{0}', space=vmem, size = 0x60000, scoped, tag = 'input window, operand 1, single buffered']
    #allocation6 [shape = 's32[1]{0}', space=sflag, size = 0x4, scoped, tag = 'scoped memory for tpu_custom_call.1']
    #allocation7 [shape = 'u8[4096]{0}', space=vmem, size = 0x1000, scoped, tag = 'input window, operand 2, single buffered']
    #allocation8 [shape = 'u8[4096]{0}', space=vmem, size = 0x1000, scoped, tag = 'output window, operand 0, single buffered']
    #allocation9 [shape = 'u8[4096]{0}', space=vmem, size = 0x1000, scoped, tag = 'output window, operand 1, single buffered']
    #allocation10 [shape = 's32[1]{0}', space=sflag, size = 0x4, scoped, tag = 'scoped memory for tpu_custom_call.1']
    %10 = vsyncpa [#allocation3], 0
    %11 = vsyncpa [#allocation6], 0
    %12 = vsyncpa [#allocation4], 0
    %13 = vsyncpa [#allocation10], 0
    // Predicated region
    $region2: #{tpu_custom_call.1} parent=1 // pred_check
      _
    $region3: #{tpu_custom_call.1} parent=1 // pred_check_branch
      %15 = sbr.rel (0) target = $region5
    $region4: #{tpu_custom_call.1} parent=1 // pred_region
      %s17 = ssub.s32 128, 128
      %18 = vsyncadd [#allocation3], %s17
      %s20 = sshll.u32 [#allocation2], 4
      %s21 = int_to_ptr.vmem [resolvable:$true] %s20
      %23 = dma.hbm_to_vmem [thread:$0]  %s0, 128, %s21, [#allocation3]
    $region5: #{tpu_custom_call.1} parent=1 // pred_fallthru
      _
    // Predicated region
    $region6: #{tpu_custom_call.1} parent=1 // pred_check
      _
    $region7: #{tpu_custom_call.1} parent=1 // pred_check_branch
      %25 = sbr.rel (0) target = $region9
    $region8: #{tpu_custom_call.1} parent=1 // pred_region
      %s27 = ssub.s32 12288, 12288
      %28 = vsyncadd [#allocation6], %s27
      %s29 = sshll.u32 [#allocation5], 4
      %s30 = int_to_ptr.vmem [resolvable:$true] %s29
      %35 = dma.hbm_to_vmem [thread:$0]  %s1, 12288, %s30, [#allocation6], 128, 128, 8
    $region9: #{tpu_custom_call.1} parent=1 // pred_fallthru
      _
    // Predicated region
    $region10: #{tpu_custom_call.1} parent=1 // pred_check
      _
    $region11: #{tpu_custom_call.1} parent=1 // pred_check_branch
      %37 = sbr.rel (0) target = $region13
    $region12: #{tpu_custom_call.1} parent=1 // pred_region
      %s39 = ssub.s32 128, 128
      %40 = vsyncadd [#allocation6], %s39
      %s42 = sshll.u32 [#allocation7], 4
      %s43 = int_to_ptr.vmem [resolvable:$true] %s42
      %45 = dma.hbm_to_vmem [thread:$0]  %s2, 128, %s43, [#allocation6]
    $region13: #{tpu_custom_call.1} parent=1 // pred_fallthru
      _
    // Predicated region
    $region14: #{tpu_custom_call.1} parent=1 // pred_check
      _
    $region15: #{tpu_custom_call.1} parent=1 // pred_check_branch
      %47 = sbr.rel (0) target = $region17
    $region16: #{tpu_custom_call.1} parent=1 // pred_region
      %48 = dma.done [#allocation3], 128
    $region17: #{tpu_custom_call.1} parent=1 // pred_fallthru
      _
    // Predicated region
    $region18: #{tpu_custom_call.1} parent=1 // pred_check
      _
    $region19: #{tpu_custom_call.1} parent=1 // pred_check_branch
      %50 = sbr.rel (0) target = $region21
    $region20: #{tpu_custom_call.1} parent=1 // pred_region
      %51 = dma.done [#allocation6], 12288
    $region21: #{tpu_custom_call.1} parent=1 // pred_fallthru
      _
    // Predicated region
    $region22: #{tpu_custom_call.1} parent=1 // pred_check
      _
    $region23: #{tpu_custom_call.1} parent=1 // pred_check_branch
      %53 = sbr.rel (0) target = $region25
    $region24: #{tpu_custom_call.1} parent=1 // pred_region
      %54 = dma.done [#allocation6], 128
    $region25: #{tpu_custom_call.1} parent=1 // pred_fallthru
      _
    %v55 = vld [vmem:[#allocation2] sm:$0xff]
    %v56 = vld [vmem:[#allocation5] sm:$0xff]
    %v57 = vld [vmem:[#allocation5 + $0x8] sm:$0xff]
    %v58 = vld [vmem:[#allocation5 + $0x10] sm:$0xff]
    %v59 = vld [vmem:[#allocation5 + $0x18] sm:$0xff]
    %v60 = vld [vmem:[#allocation5 + $0x20] sm:$0xff]
    %v61 = vld [vmem:[#allocation5 + $0x28] sm:$0xff]
    %v62 = vld [vmem:[#allocation5 + $0x30] sm:$0xff]
    %v63 = vld [vmem:[#allocation5 + $0x38] sm:$0xff]
    %v64 = vld [vmem:[#allocation5 + $0x40] sm:$0xff]
    %v65 = vld [vmem:[#allocation5 + $0x48] sm:$0xff]
    %v66 = vld [vmem:[#allocation5 + $0x50] sm:$0xff]
    %v67 = vld [vmem:[#allocation5 + $0x58] sm:$0xff]
    %v68 = vld [vmem:[#allocation5 + $0x60] sm:$0xff]
    %v69 = vld [vmem:[#allocation5 + $0x68] sm:$0xff]
    %v70 = vld [vmem:[#allocation5 + $0x70] sm:$0xff]
    %v71 = vld [vmem:[#allocation5 + $0x78] sm:$0xff]
    %v72 = vld [vmem:[#allocation7] sm:$0x1]
    %v73 = vlaneseq
    %v74 = vshrl.u32 %v73, 7
    %v75 = vsub.s32 0, %v74
    %v76 = vrot.slane %v72, %v75
    %77 = vmatprep.subr.mxu0 0.0
    %78 = vmatpush1.msra.mxu0 %v56
    %79 = vmatprep.subr.mxu0 0.0
    %80 = vmatpush1.msra.mxu0 %v57
    %81 = vmatprep.subr.mxu0 0.0
    %82 = vmatpush1.msra.mxu0 %v58
    %83 = vmatprep.subr.mxu0 0.0
    %84 = vmatpush1.msra.mxu0 %v59
    %85 = vmatprep.subr.mxu0 0.0
    %86 = vmatpush1.msra.mxu0 %v60
    %87 = vmatprep.subr.mxu0 0.0
    %88 = vmatpush1.msra.mxu0 %v61
    %89 = vmatprep.subr.mxu0 0.0
    %90 = vmatpush1.msra.mxu0 %v62
    %91 = vmatprep.subr.mxu0 0.0
    %92 = vmatpush1.msra.mxu0 %v63
    %93 = vmatprep.subr.mxu0 0.0
    %94 = vmatpush1.msra.mxu0 %v64
    %95 = vmatprep.subr.mxu0 0.0
    %96 = vmatpush1.msra.mxu0 %v65
    %97 = vmatprep.subr.mxu0 0.0
    %98 = vmatpush1.msra.mxu0 %v66
    %99 = vmatprep.subr.mxu0 0.0
    %100 = vmatpush1.msra.mxu0 %v67
    %101 = vmatprep.subr.mxu0 0.0
    %102 = vmatpush1.msra.mxu0 %v68
    %103 = vmatprep.subr.mxu0 0.0
    %104 = vmatpush1.msra.mxu0 %v69
    %105 = vmatprep.subr.mxu0 0.0
    %106 = vmatpush1.msra.mxu0 %v70
    %107 = vmatprep.subr.mxu0 0.0
    %108 = vmatpush1.msra.mxu0 %v71
    %109 = vmatprep.subr.mxu0 0.0
    %110 = vmatpush1.msra.mxu0 0.0
    %111 = vmatprep.subr.mxu0 0.0
    %112 = vmatpush1.msra.mxu0 0.0
    %113 = vmatprep.subr.mxu0 0.0
    %114 = vmatpush1.msra.mxu0 0.0
    %115 = vmatprep.subr.mxu0 0.0
    %116 = vmatpush1.msra.mxu0 0.0
    %117 = vmatprep.subr.mxu0 0.0
    %118 = vmatpush1.msra.mxu0 0.0
    %119 = vmatprep.subr.mxu0 0.0
    %120 = vmatpush1.msra.mxu0 0.0
    %121 = vmatprep.subr.mxu0 0.0
    %122 = vmatpush1.msra.mxu0 0.0
    %123 = vmatprep.subr.mxu0 0.0
    %124 = vmatpush1.msra.mxu0 0.0
    %125 = vmatprep.subr.mxu0 0.0
    %126 = vmatpush1.msra.mxu0 0.0
    %127 = vmatprep.subr.mxu0 0.0
    %128 = vmatpush1.msra.mxu0 0.0
    %129 = vmatprep.subr.mxu0 0.0
    %130 = vmatpush1.msra.mxu0 0.0
    %131 = vmatprep.subr.mxu0 0.0
    %132 = vmatpush1.msra.mxu0 0.0
    %133 = vmatprep.subr.mxu0 0.0
    %134 = vmatpush1.msra.mxu0 0.0
    %135 = vmatprep.subr.mxu0 0.0
    %136 = vmatpush1.msra.mxu0 0.0
    %137 = vmatprep.subr.mxu0 0.0
    %138 = vmatpush1.msra.mxu0 0.0
    %139 = vmatprep.subr.mxu0 0.0
    %140 = vmatpush1.msra.mxu0 0.0
    %141 = vmatprep.mubr.f32.mxu0 0.0
    %142 = vmatmul.mubr.f32.gmra.mrb[0].mxu0 %v55
    %v143 = vpop.f32.mrb[0].mxu0
    %v144 = vadd.f32 %v76, %v143
    %v145 = vpop.f32.mrb[0].mxu0
    %146 = vdwg.mxu0
    %v147 = vmul.f32 %v144, 0.5
    %v148 = vmul.f32 %v144, 0.70710677
    %v149 = verf.f32.pop %v148
    %v150 = vadd.f32 %v149, 1.0
    %v151 = vmul.f32 %v147, %v150
    %s152 = scalar_lea.vmem [#allocation5], 128
    %v153 = vld [vmem:[%s152] sm:$0xff]
    %v154 = vld [vmem:[%s152 + $0x8] sm:$0xff]
    %v155 = vld [vmem:[%s152 + $0x10] sm:$0xff]
    %v156 = vld [vmem:[%s152 + $0x18] sm:$0xff]
    %v157 = vld [vmem:[%s152 + $0x20] sm:$0xff]
    %v158 = vld [vmem:[%s152 + $0x28] sm:$0xff]
    %v159 = vld [vmem:[%s152 + $0x30] sm:$0xff]
    %v160 = vld [vmem:[%s152 + $0x38] sm:$0xff]
    %v161 = vld [vmem:[%s152 + $0x40] sm:$0xff]
    %v162 = vld [vmem:[%s152 + $0x48] sm:$0xff]
    %v163 = vld [vmem:[%s152 + $0x50] sm:$0xff]
    %v164 = vld [vmem:[%s152 + $0x58] sm:$0xff]
    %v165 = vld [vmem:[%s152 + $0x60] sm:$0xff]
    %v166 = vld [vmem:[%s152 + $0x68] sm:$0xff]
    %v167 = vld [vmem:[%s152 + $0x70] sm:$0xff]
    %v168 = vld [vmem:[%s152 + $0x78] sm:$0xff]
    %v169 = vld [vmem:[#allocation7 + $0x1] sm:$0x1]
    %v170 = vlaneseq
    %v171 = vshrl.u32 %v170, 7
    %v172 = vsub.s32 0, %v171
    %v173 = vrot.slane %v169, %v172
    %174 = vmatprep.subr.mxu0 0.0
    %175 = vmatpush1.msra.mxu0 %v153
    %176 = vmatprep.subr.mxu0 0.0
    %177 = vmatpush1.msra.mxu0 %v154
    %178 = vmatprep.subr.mxu0 0.0
    %179 = vmatpush1.msra.mxu0 %v155
    %180 = vmatprep.subr.mxu0 0.0
    %181 = vmatpush1.msra.mxu0 %v156
    %182 = vmatprep.subr.mxu0 0.0
    %183 = vmatpush1.msra.mxu0 %v157
    %184 = vmatprep.subr.mxu0 0.0
    %185 = vmatpush1.msra.mxu0 %v158
    %186 = vmatprep.subr.mxu0 0.0
    %187 = vmatpush1.msra.mxu0 %v159
    %188 = vmatprep.subr.mxu0 0.0
    %189 = vmatpush1.msra.mxu0 %v160
    %190 = vmatprep.subr.mxu0 0.0
    %191 = vmatpush1.msra.mxu0 %v161
    %192 = vmatprep.subr.mxu0 0.0
    %193 = vmatpush1.msra.mxu0 %v162
    %194 = vmatprep.subr.mxu0 0.0
    %195 = vmatpush1.msra.mxu0 %v163
    %196 = vmatprep.subr.mxu0 0.0
    %197 = vmatpush1.msra.mxu0 %v164
    %198 = vmatprep.subr.mxu0 0.0
    %199 = vmatpush1.msra.mxu0 %v165
    %200 = vmatprep.subr.mxu0 0.0
    %201 = vmatpush1.msra.mxu0 %v166
    %202 = vmatprep.subr.mxu0 0.0
    %203 = vmatpush1.msra.mxu0 %v167
    %204 = vmatprep.subr.mxu0 0.0
    %205 = vmatpush1.msra.mxu0 %v168
    %206 = vmatprep.subr.mxu0 0.0
    %207 = vmatpush1.msra.mxu0 0.0
    %208 = vmatprep.subr.mxu0 0.0
    %209 = vmatpush1.msra.mxu0 0.0
    %210 = vmatprep.subr.mxu0 0.0
    %211 = vmatpush1.msra.mxu0 0.0
    %212 = vmatprep.subr.mxu0 0.0
    %213 = vmatpush1.msra.mxu0 0.0
    %214 = vmatprep.subr.mxu0 0.0
    %215 = vmatpush1.msra.mxu0 0.0
    %216 = vmatprep.subr.mxu0 0.0
    %217 = vmatpush1.msra.mxu0 0.0
    %218 = vmatprep.subr.mxu0 0.0
    %219 = vmatpush1.msra.mxu0 0.0
    %220 = vmatprep.subr.mxu0 0.0
    %221 = vmatpush1.msra.mxu0 0.0
    %222 = vmatprep.subr.mxu0 0.0
    %223 = vmatpush1.msra.mxu0 0.0
    %224 = vmatprep.subr.mxu0 0.0
    %225 = vmatpush1.msra.mxu0 0.0
    %226 = vmatprep.subr.mxu0 0.0
    %227 = vmatpush1.msra.mxu0 0.0
    %228 = vmatprep.subr.mxu0 0.0
    %229 = vmatpush1.msra.mxu0 0.0
    %230 = vmatprep.subr.mxu0 0.0
    %231 = vmatpush1.msra.mxu0 0.0
    %232 = vmatprep.subr.mxu0 0.0
    %233 = vmatpush1.msra.mxu0 0.0
    %234 = vmatprep.subr.mxu0 0.0
    %235 = vmatpush1.msra.mxu0 0.0
    %236 = vmatprep.subr.mxu0 0.0
    %237 = vmatpush1.msra.mxu0 0.0
    %238 = vmatprep.mubr.f32.mxu0 0.0
    %239 = vmatmul.mubr.f32.gmra.mrb[0].mxu0 %v151
    %v240 = vpop.f32.mrb[0].mxu0
    %v241 = vadd.f32 %v173, %v240
    %v242 = vpop.f32.mrb[0].mxu0
    %243 = vdwg.mxu0
    %v244 = vmul.f32 %v241, 0.5
    %v245 = vmul.f32 %v241, 0.70710677
    %v246 = verf.f32.pop %v245
    %v247 = vadd.f32 %v246, 1.0
    %v248 = vmul.f32 %v244, %v247
    %s249 = scalar_lea.vmem [#allocation5], 256
    %v250 = vld [vmem:[%s249] sm:$0xff]
    %v251 = vld [vmem:[%s249 + $0x8] sm:$0xff]
    %v252 = vld [vmem:[%s249 + $0x10] sm:$0xff]
    %v253 = vld [vmem:[%s249 + $0x18] sm:$0xff]
    %v254 = vld [vmem:[%s249 + $0x20] sm:$0xff]
    %v255 = vld [vmem:[%s249 + $0x28] sm:$0xff]
    %v256 = vld [vmem:[%s249 + $0x30] sm:$0xff]
    %v257 = vld [vmem:[%s249 + $0x38] sm:$0xff]
    %v258 = vld [vmem:[%s249 + $0x40] sm:$0xff]
    %v259 = vld [vmem:[%s249 + $0x48] sm:$0xff]
    %v260 = vld [vmem:[%s249 + $0x50] sm:$0xff]
    %v261 = vld [vmem:[%s249 + $0x58] sm:$0xff]
    %v262 = vld [vmem:[%s249 + $0x60] sm:$0xff]
    %v263 = vld [vmem:[%s249 + $0x68] sm:$0xff]
    %v264 = vld [vmem:[%s249 + $0x70] sm:$0xff]
    %v265 = vld [vmem:[%s249 + $0x78] sm:$0xff]
    %v266 = vld [vmem:[#allocation7 + $0x2] sm:$0x1]
    %v267 = vlaneseq
    %v268 = vshrl.u32 %v267, 7
    %v269 = vsub.s32 0, %v268
    %v270 = vrot.slane %v266, %v269
    %271 = vmatprep.subr.mxu0 0.0
    %272 = vmatpush1.msra.mxu0 %v250
    %273 = vmatprep.subr.mxu0 0.0
    %274 = vmatpush1.msra.mxu0 %v251
    %275 = vmatprep.subr.mxu0 0.0
    %276 = vmatpush1.msra.mxu0 %v252
    %277 = vmatprep.subr.mxu0 0.0
    %278 = vmatpush1.msra.mxu0 %v253
    %279 = vmatprep.subr.mxu0 0.0
    %280 = vmatpush1.msra.mxu0 %v254
    %281 = vmatprep.subr.mxu0 0.0
    %282 = vmatpush1.msra.mxu0 %v255
    %283 = vmatprep.subr.mxu0 0.0
    %284 = vmatpush1.msra.mxu0 %v256
    %285 = vmatprep.subr.mxu0 0.0
    %286 = vmatpush1.msra.mxu0 %v257
    %287 = vmatprep.subr.mxu0 0.0
    %288 = vmatpush1.msra.mxu0 %v258
    %289 = vmatprep.subr.mxu0 0.0
    %290 = vmatpush1.msra.mxu0 %v259
    %291 = vmatprep.subr.mxu0 0.0
    %292 = vmatpush1.msra.mxu0 %v260
    %293 = vmatprep.subr.mxu0 0.0
    %294 = vmatpush1.msra.mxu0 %v261
    %295 = vmatprep.subr.mxu0 0.0
    %296 = vmatpush1.msra.mxu0 %v262
    %297 = vmatprep.subr.mxu0 0.0
    %298 = vmatpush1.msra.mxu0 %v263
    %299 = vmatprep.subr.mxu0 0.0
    %300 = vmatpush1.msra.mxu0 %v264
    %301 = vmatprep.subr.mxu0 0.0
    %302 = vmatpush1.msra.mxu0 %v265
    %303 = vmatprep.subr.mxu0 0.0
    %304 = vmatpush1.msra.mxu0 0.0
    %305 = vmatprep.subr.mxu0 0.0
    %306 = vmatpush1.msra.mxu0 0.0
    %307 = vmatprep.subr.mxu0 0.0
    %308 = vmatpush1.msra.mxu0 0.0
    %309 = vmatprep.subr.mxu0 0.0
    %310 = vmatpush1.msra.mxu0 0.0
    %311 = vmatprep.subr.mxu0 0.0
    %312 = vmatpush1.msra.mxu0 0.0
    %313 = vmatprep.subr.mxu0 0.0
    %314 = vmatpush1.msra.mxu0 0.0
    %315 = vmatprep.subr.mxu0 0.0
    %316 = vmatpush1.msra.mxu0 0.0
    %317 = vmatprep.subr.mxu0 0.0
    %318 = vmatpush1.msra.mxu0 0.0
    %319 = vmatprep.subr.mxu0 0.0
    %320 = vmatpush1.msra.mxu0 0.0
    %321 = vmatprep.subr.mxu0 0.0
    %322 = vmatpush1.msra.mxu0 0.0
    %323 = vmatprep.subr.mxu0 0.0
    %324 = vmatpush1.msra.mxu0 0.0
    %325 = vmatprep.subr.mxu0 0.0
    %326 = vmatpush1.msra.mxu0 0.0
    %327 = vmatprep.subr.mxu0 0.0
    %328 = vmatpush1.msra.mxu0 0.0
    %329 = vmatprep.subr.mxu0 0.0
    %330 = vmatpush1.msra.mxu0 0.0
    %331 = vmatprep.subr.mxu0 0.0
    %332 = vmatpush1.msra.mxu0 0.0
    %333 = vmatprep.subr.mxu0 0.0
    %334 = vmatpush1.msra.mxu0 0.0
    %335 = vmatprep.mubr.f32.mxu0 0.0
    %336 = vmatmul.mubr.f32.gmra.mrb[0].mxu0 %v248
    %v337 = vpop.f32.mrb[0].mxu0
    %v338 = vadd.f32 %v270, %v337
    %v339 = vpop.f32.mrb[0].mxu0
    %340 = vdwg.mxu0
    %341 = vst [vmem:[#allocation9] sm:$0xff] %v338
    %s342 = scalar_lea.vmem [#allocation5], 384
    %v343 = vld [vmem:[%s342] sm:$0xff]
    %v344 = vld [vmem:[%s342 + $0x8] sm:$0xff]
    %v345 = vld [vmem:[%s342 + $0x10] sm:$0xff]
    %v346 = vld [vmem:[%s342 + $0x18] sm:$0xff]
    %v347 = vld [vmem:[%s342 + $0x20] sm:$0xff]
    %v348 = vld [vmem:[%s342 + $0x28] sm:$0xff]
    %v349 = vld [vmem:[%s342 + $0x30] sm:$0xff]
    %v350 = vld [vmem:[%s342 + $0x38] sm:$0xff]
    %v351 = vld [vmem:[%s342 + $0x40] sm:$0xff]
    %v352 = vld [vmem:[%s342 + $0x48] sm:$0xff]
    %v353 = vld [vmem:[%s342 + $0x50] sm:$0xff]
    %v354 = vld [vmem:[%s342 + $0x58] sm:$0xff]
    %v355 = vld [vmem:[%s342 + $0x60] sm:$0xff]
    %v356 = vld [vmem:[%s342 + $0x68] sm:$0xff]
    %v357 = vld [vmem:[%s342 + $0x70] sm:$0xff]
    %v358 = vld [vmem:[%s342 + $0x78] sm:$0xff]
    %v359 = vld [vmem:[#allocation7 + $0x3] sm:$0x1]
    %v360 = vlaneseq
    %v361 = vshrl.u32 %v360, 7
    %v362 = vsub.s32 0, %v361
    %v363 = vrot.slane %v359, %v362
    %364 = vmatprep.subr.mxu0 0.0
    %365 = vmatpush1.msra.mxu0 %v343
    %366 = vmatprep.subr.mxu0 0.0
    %367 = vmatpush1.msra.mxu0 %v344
    %368 = vmatprep.subr.mxu0 0.0
    %369 = vmatpush1.msra.mxu0 %v345
    %370 = vmatprep.subr.mxu0 0.0
    %371 = vmatpush1.msra.mxu0 %v346
    %372 = vmatprep.subr.mxu0 0.0
    %373 = vmatpush1.msra.mxu0 %v347
    %374 = vmatprep.subr.mxu0 0.0
    %375 = vmatpush1.msra.mxu0 %v348
    %376 = vmatprep.subr.mxu0 0.0
    %377 = vmatpush1.msra.mxu0 %v349
    %378 = vmatprep.subr.mxu0 0.0
    %379 = vmatpush1.msra.mxu0 %v350
    %380 = vmatprep.subr.mxu0 0.0
    %381 = vmatpush1.msra.mxu0 %v351
    %382 = vmatprep.subr.mxu0 0.0
    %383 = vmatpush1.msra.mxu0 %v352
    %384 = vmatprep.subr.mxu0 0.0
    %385 = vmatpush1.msra.mxu0 %v353
    %386 = vmatprep.subr.mxu0 0.0
    %387 = vmatpush1.msra.mxu0 %v354
    %388 = vmatprep.subr.mxu0 0.0
    %389 = vmatpush1.msra.mxu0 %v355
    %390 = vmatprep.subr.mxu0 0.0
    %391 = vmatpush1.msra.mxu0 %v356
    %392 = vmatprep.subr.mxu0 0.0
    %393 = vmatpush1.msra.mxu0 %v357
    %394 = vmatprep.subr.mxu0 0.0
    %395 = vmatpush1.msra.mxu0 %v358
    %396 = vmatprep.subr.mxu0 0.0
    %397 = vmatpush1.msra.mxu0 0.0
    %398 = vmatprep.subr.mxu0 0.0
    %399 = vmatpush1.msra.mxu0 0.0
    %400 = vmatprep.subr.mxu0 0.0
    %401 = vmatpush1.msra.mxu0 0.0
    %402 = vmatprep.subr.mxu0 0.0
    %403 = vmatpush1.msra.mxu0 0.0
    %404 = vmatprep.subr.mxu0 0.0
    %405 = vmatpush1.msra.mxu0 0.0
    %406 = vmatprep.subr.mxu0 0.0
    %407 = vmatpush1.msra.mxu0 0.0
    %408 = vmatprep.subr.mxu0 0.0
    %409 = vmatpush1.msra.mxu0 0.0
    %410 = vmatprep.subr.mxu0 0.0
    %411 = vmatpush1.msra.mxu0 0.0
    %412 = vmatprep.subr.mxu0 0.0
    %413 = vmatpush1.msra.mxu0 0.0
    %414 = vmatprep.subr.mxu0 0.0
    %415 = vmatpush1.msra.mxu0 0.0
    %416 = vmatprep.subr.mxu0 0.0
    %417 = vmatpush1.msra.mxu0 0.0
    %418 = vmatprep.subr.mxu0 0.0
    %419 = vmatpush1.msra.mxu0 0.0
    %420 = vmatprep.subr.mxu0 0.0
    %421 = vmatpush1.msra.mxu0 0.0
    %422 = vmatprep.subr.mxu0 0.0
    %423 = vmatpush1.msra.mxu0 0.0
    %424 = vmatprep.subr.mxu0 0.0
    %425 = vmatpush1.msra.mxu0 0.0
    %426 = vmatprep.subr.mxu0 0.0
    %427 = vmatpush1.msra.mxu0 0.0
    %428 = vmatprep.mubr.f32.mxu0 0.0
    %429 = vmatmul.mubr.f32.gmra.mrb[0].mxu0 %v338
    %v430 = vpop.f32.mrb[0].mxu0
    %v431 = vadd.f32 %v363, %v430
    %v432 = vpop.f32.mrb[0].mxu0
    %433 = vdwg.mxu0
    %v434 = vmul.f32 %v431, 0.5
    %v435 = vmul.f32 %v431, 0.70710677
    %v436 = verf.f32.pop %v435
    %v437 = vadd.f32 %v436, 1.0
    %v438 = vmul.f32 %v434, %v437
    %s439 = scalar_lea.vmem [#allocation5], 512
    %v440 = vld [vmem:[%s439] sm:$0xff]
    %v441 = vld [vmem:[%s439 + $0x8] sm:$0xff]
    %v442 = vld [vmem:[%s439 + $0x10] sm:$0xff]
    %v443 = vld [vmem:[%s439 + $0x18] sm:$0xff]
    %v444 = vld [vmem:[%s439 + $0x20] sm:$0xff]
    %v445 = vld [vmem:[%s439 + $0x28] sm:$0xff]
    %v446 = vld [vmem:[%s439 + $0x30] sm:$0xff]
    %v447 = vld [vmem:[%s439 + $0x38] sm:$0xff]
    %v448 = vld [vmem:[%s439 + $0x40] sm:$0xff]
    %v449 = vld [vmem:[%s439 + $0x48] sm:$0xff]
    %v450 = vld [vmem:[%s439 + $0x50] sm:$0xff]
    %v451 = vld [vmem:[%s439 + $0x58] sm:$0xff]
    %v452 = vld [vmem:[%s439 + $0x60] sm:$0xff]
    %v453 = vld [vmem:[%s439 + $0x68] sm:$0xff]
    %v454 = vld [vmem:[%s439 + $0x70] sm:$0xff]
    %v455 = vld [vmem:[%s439 + $0x78] sm:$0xff]
    %v456 = vld [vmem:[#allocation7 + $0x4] sm:$0x1]
    %v457 = vlaneseq
    %v458 = vshrl.u32 %v457, 7
    %v459 = vsub.s32 0, %v458
    %v460 = vrot.slane %v456, %v459
    %461 = vmatprep.subr.mxu0 0.0
    %462 = vmatpush1.msra.mxu0 %v440
    %463 = vmatprep.subr.mxu0 0.0
    %464 = vmatpush1.msra.mxu0 %v441
    %465 = vmatprep.subr.mxu0 0.0
    %466 = vmatpush1.msra.mxu0 %v442
    %467 = vmatprep.subr.mxu0 0.0
    %468 = vmatpush1.msra.mxu0 %v443
    %469 = vmatprep.subr.mxu0 0.0
    %470 = vmatpush1.msra.mxu0 %v444
    %471 = vmatprep.subr.mxu0 0.0
    %472 = vmatpush1.msra.mxu0 %v445
    %473 = vmatprep.subr.mxu0 0.0
    %474 = vmatpush1.msra.mxu0 %v446
    %475 = vmatprep.subr.mxu0 0.0
    %476 = vmatpush1.msra.mxu0 %v447
    %477 = vmatprep.subr.mxu0 0.0
    %478 = vmatpush1.msra.mxu0 %v448
    %479 = vmatprep.subr.mxu0 0.0
    %480 = vmatpush1.msra.mxu0 %v449
    %481 = vmatprep.subr.mxu0 0.0
    %482 = vmatpush1.msra.mxu0 %v450
    %483 = vmatprep.subr.mxu0 0.0
    %484 = vmatpush1.msra.mxu0 %v451
    %485 = vmatprep.subr.mxu0 0.0
    %486 = vmatpush1.msra.mxu0 %v452
    %487 = vmatprep.subr.mxu0 0.0
    %488 = vmatpush1.msra.mxu0 %v453
    %489 = vmatprep.subr.mxu0 0.0
    %490 = vmatpush1.msra.mxu0 %v454
    %491 = vmatprep.subr.mxu0 0.0
    %492 = vmatpush1.msra.mxu0 %v455
    %493 = vmatprep.subr.mxu0 0.0
    %494 = vmatpush1.msra.mxu0 0.0
    %495 = vmatprep.subr.mxu0 0.0
    %496 = vmatpush1.msra.mxu0 0.0
    %497 = vmatprep.subr.mxu0 0.0
    %498 = vmatpush1.msra.mxu0 0.0
    %499 = vmatprep.subr.mxu0 0.0
    %500 = vmatpush1.msra.mxu0 0.0
    %501 = vmatprep.subr.mxu0 0.0
    %502 = vmatpush1.msra.mxu0 0.0
    %503 = vmatprep.subr.mxu0 0.0
    %504 = vmatpush1.msra.mxu0 0.0
    %505 = vmatprep.subr.mxu0 0.0
    %506 = vmatpush1.msra.mxu0 0.0
    %507 = vmatprep.subr.mxu0 0.0
    %508 = vmatpush1.msra.mxu0 0.0
    %509 = vmatprep.subr.mxu0 0.0
    %510 = vmatpush1.msra.mxu0 0.0
    %511 = vmatprep.subr.mxu0 0.0
    %512 = vmatpush1.msra.mxu0 0.0
    %513 = vmatprep.subr.mxu0 0.0
    %514 = vmatpush1.msra.mxu0 0.0
    %515 = vmatprep.subr.mxu0 0.0
    %516 = vmatpush1.msra.mxu0 0.0
    %517 = vmatprep.subr.mxu0 0.0
    %518 = vmatpush1.msra.mxu0 0.0
    %519 = vmatprep.subr.mxu0 0.0
    %520 = vmatpush1.msra.mxu0 0.0
    %521 = vmatprep.subr.mxu0 0.0
    %522 = vmatpush1.msra.mxu0 0.0
    %523 = vmatprep.subr.mxu0 0.0
    %524 = vmatpush1.msra.mxu0 0.0
    %525 = vmatprep.mubr.f32.mxu0 0.0
    %526 = vmatmul.mubr.f32.gmra.mrb[0].mxu0 %v438
    %v527 = vpop.f32.mrb[0].mxu0
    %v528 = vadd.f32 %v460, %v527
    %v529 = vpop.f32.mrb[0].mxu0
    %530 = vdwg.mxu0
    %v531 = vmul.f32 %v528, 0.5
    %v532 = vmul.f32 %v528, 0.70710677
    %v533 = verf.f32.pop %v532
    %v534 = vadd.f32 %v533, 1.0
    %v535 = vmul.f32 %v531, %v534
    %s536 = scalar_lea.vmem [#allocation5], 640
    %v537 = vld [vmem:[%s536] sm:$0xff]
    %v538 = vld [vmem:[%s536 + $0x8] sm:$0xff]
    %v539 = vld [vmem:[%s536 + $0x10] sm:$0xff]
    %v540 = vld [vmem:[%s536 + $0x18] sm:$0xff]
    %v541 = vld [vmem:[%s536 + $0x20] sm:$0xff]
    %v542 = vld [vmem:[%s536 + $0x28] sm:$0xff]
    %v543 = vld [vmem:[%s536 + $0x30] sm:$0xff]
    %v544 = vld [vmem:[%s536 + $0x38] sm:$0xff]
    %v545 = vld [vmem:[%s536 + $0x40] sm:$0xff]
    %v546 = vld [vmem:[%s536 + $0x48] sm:$0xff]
    %v547 = vld [vmem:[%s536 + $0x50] sm:$0xff]
    %v548 = vld [vmem:[%s536 + $0x58] sm:$0xff]
    %v549 = vld [vmem:[%s536 + $0x60] sm:$0xff]
    %v550 = vld [vmem:[%s536 + $0x68] sm:$0xff]
    %v551 = vld [vmem:[%s536 + $0x70] sm:$0xff]
    %v552 = vld [vmem:[%s536 + $0x78] sm:$0xff]
    %v553 = vld [vmem:[#allocation7 + $0x5] sm:$0x1]
    %v554 = vlaneseq
    %v555 = vshrl.u32 %v554, 7
    %v556 = vsub.s32 0, %v555
    %v557 = vrot.slane %v553, %v556
    %558 = vmatprep.subr.mxu0 0.0
    %559 = vmatpush1.msra.mxu0 %v537
    %560 = vmatprep.subr.mxu0 0.0
    %561 = vmatpush1.msra.mxu0 %v538
    %562 = vmatprep.subr.mxu0 0.0
    %563 = vmatpush1.msra.mxu0 %v539
    %564 = vmatprep.subr.mxu0 0.0
    %565 = vmatpush1.msra.mxu0 %v540
    %566 = vmatprep.subr.mxu0 0.0
    %567 = vmatpush1.msra.mxu0 %v541
    %568 = vmatprep.subr.mxu0 0.0
    %569 = vmatpush1.msra.mxu0 %v542
    %570 = vmatprep.subr.mxu0 0.0
    %571 = vmatpush1.msra.mxu0 %v543
    %572 = vmatprep.subr.mxu0 0.0
    %573 = vmatpush1.msra.mxu0 %v544
    %574 = vmatprep.subr.mxu0 0.0
    %575 = vmatpush1.msra.mxu0 %v545
    %576 = vmatprep.subr.mxu0 0.0
    %577 = vmatpush1.msra.mxu0 %v546
    %578 = vmatprep.subr.mxu0 0.0
    %579 = vmatpush1.msra.mxu0 %v547
    %580 = vmatprep.subr.mxu0 0.0
    %581 = vmatpush1.msra.mxu0 %v548
    %582 = vmatprep.subr.mxu0 0.0
    %583 = vmatpush1.msra.mxu0 %v549
    %584 = vmatprep.subr.mxu0 0.0
    %585 = vmatpush1.msra.mxu0 %v550
    %586 = vmatprep.subr.mxu0 0.0
    %587 = vmatpush1.msra.mxu0 %v551
    %588 = vmatprep.subr.mxu0 0.0
    %589 = vmatpush1.msra.mxu0 %v552
    %590 = vmatprep.subr.mxu0 0.0
    %591 = vmatpush1.msra.mxu0 0.0
    %592 = vmatprep.subr.mxu0 0.0
    %593 = vmatpush1.msra.mxu0 0.0
    %594 = vmatprep.subr.mxu0 0.0
    %595 = vmatpush1.msra.mxu0 0.0
    %596 = vmatprep.subr.mxu0 0.0
    %597 = vmatpush1.msra.mxu0 0.0
    %598 = vmatprep.subr.mxu0 0.0
    %599 = vmatpush1.msra.mxu0 0.0
    %600 = vmatprep.subr.mxu0 0.0
    %601 = vmatpush1.msra.mxu0 0.0
    %602 = vmatprep.subr.mxu0 0.0
    %603 = vmatpush1.msra.mxu0 0.0
    %604 = vmatprep.subr.mxu0 0.0
    %605 = vmatpush1.msra.mxu0 0.0
    %606 = vmatprep.subr.mxu0 0.0
    %607 = vmatpush1.msra.mxu0 0.0
    %608 = vmatprep.subr.mxu0 0.0
    %609 = vmatpush1.msra.mxu0 0.0
    %610 = vmatprep.subr.mxu0 0.0
    %611 = vmatpush1.msra.mxu0 0.0
    %612 = vmatprep.subr.mxu0 0.0
    %613 = vmatpush1.msra.mxu0 0.0
    %614 = vmatprep.subr.mxu0 0.0
    %615 = vmatpush1.msra.mxu0 0.0
    %616 = vmatprep.subr.mxu0 0.0
    %617 = vmatpush1.msra.mxu0 0.0
    %618 = vmatprep.subr.mxu0 0.0
    %619 = vmatpush1.msra.mxu0 0.0
    %620 = vmatprep.subr.mxu0 0.0
    %621 = vmatpush1.msra.mxu0 0.0
    %622 = vmatprep.mubr.f32.mxu0 0.0
    %623 = vmatmul.mubr.f32.gmra.mrb[0].mxu0 %v535
    %v624 = vpop.f32.mrb[0].mxu0
    %v625 = vadd.f32 %v557, %v624
    %v626 = vpop.f32.mrb[0].mxu0
    %627 = vdwg.mxu0
    %v628 = vmax.f32 %v625, 0.0
    %629 = vst [vmem:[#allocation8] sm:$0xff] %v628
    // Predicated region
    $region26: #{tpu_custom_call.1} parent=1 // pred_check
      _
    $region27: #{tpu_custom_call.1} parent=1 // pred_check_branch
      %631 = sbr.rel (0) target = $region29
    $region28: #{tpu_custom_call.1} parent=1 // pred_region
      %s633 = ssub.s32 128, 128
      %634 = vsyncadd [#allocation4], %s633
      %s636 = sshll.u32 [#allocation8], 4
      %s637 = int_to_ptr.vmem [resolvable:$true] %s636
      %639 = dma.vmem_to_hbm [thread:$0]  %s637, 128, %s3, [#allocation4]
    $region29: #{tpu_custom_call.1} parent=1 // pred_fallthru
      _
    // Predicated region
    $region30: #{tpu_custom_call.1} parent=1 // pred_check
      _
    $region31: #{tpu_custom_call.1} parent=1 // pred_check_branch
      %641 = sbr.rel (0) target = $region33
    $region32: #{tpu_custom_call.1} parent=1 // pred_region
      %s643 = ssub.s32 128, 128
      %644 = vsyncadd [#allocation10], %s643
      %s646 = sshll.u32 [#allocation9], 4
      %s647 = int_to_ptr.vmem [resolvable:$true] %s646
      %649 = dma.vmem_to_hbm [thread:$0]  %s647, 128, %s4, [#allocation10]
    $region33: #{tpu_custom_call.1} parent=1 // pred_fallthru
      _
    // Predicated region
    $region34: #{tpu_custom_call.1} parent=1 // pred_check
      _
    $region35: #{tpu_custom_call.1} parent=1 // pred_check_branch
      %651 = sbr.rel (0) target = $region37
    $region36: #{tpu_custom_call.1} parent=1 // pred_region
      %652 = dma.done [#allocation4], 128
    $region37: #{tpu_custom_call.1} parent=1 // pred_fallthru
      _
    // Predicated region
    $region38: #{tpu_custom_call.1} parent=1 // pred_check
      _
    $region39: #{tpu_custom_call.1} parent=1 // pred_check_branch
      %654 = sbr.rel (0) target = $region41
    $region40: #{tpu_custom_call.1} parent=1 // pred_region
      %655 = dma.done [#allocation10], 128
    $region41: #{tpu_custom_call.1} parent=1 // pred_fallthru
      _
    %656 = vsyncpa [#allocation3], 1
    %657 = vsyncpa [#allocation6], 1
    %658 = vsyncpa [#allocation4], 1
    %659 = vsyncpa [#allocation10], 1

</llo_original>
